<compile_context>
chip_gen: v7x
topology: tpu7x:2x2x1
jax: 0.10.0
libtpu: 0.0.40
codegen_flags: <defaults>
</compile_context>

<pallas_src>
import jax
import jax.numpy as jnp
from jax import lax
from jax.experimental import pallas as pl
from jax.experimental.pallas import tpu as pltpu

_PACK = 64                       # rows packed per lane-dense super-row
_MAX_TILE_PACKED = 512           # packed rows/tile  (~9.5 MiB dbl-buffered in+out)
_MIN_TILE_PACKED = 128           # keep per-step DMA >> 0.35 us step overhead
_MAX_TILE_NARROW = 8192          # narrow rows/tile  (~16 MiB dbl-buffered, lane-padded)
_MIN_TILE_NARROW = 1024
_VMEM_LIMIT = 40 * 1024 * 1024   # > default scoped limit (16/32 MiB), < v7x 64 MiB phys


def _round_up(a, b):
    return ((a + b - 1) // b) * b


def _choose_tile(n_rows, lo, hi):
    """Row tile: multiple of 8, <= hi (VMEM cap), >= lo when there is that much
    work (amortize ~0.35us/step), and aim for >= ~8 grid steps so the v7x
    megacore 'parallel' axis actually splits across both TensorCores."""
    t = _round_up(pl.cdiv(n_rows, 8), 8)          # ~8 grid steps if possible
    t = max(t, lo)                                # but keep tiles meaningful
    t = min(t, hi, _round_up(n_rows, 8))          # VMEM cap / don't exceed data
    return max(t, 8)


def _linmod_kernel(x_ref, w_ref, b_ref, out_ref):
    # x_ref:   (TN, K)  row tile of (packed) input
    # w_ref:   (K, C)   (packed block-diagonal) weight, VMEM-resident constant
    # b_ref:   (1, C)   (tiled) bias row
    # out_ref: (TN, C)  logits tile
    out_ref[...] = (
        jnp.dot(
            x_ref[...],
            w_ref[...],
            preferred_element_type=jnp.float32,
            precision=lax.Precision.HIGHEST,   # match torch f32 Linear
        )
        + b_ref[...]                           # broadcast bias over rows
    )


def _run(x2d, w2d, b2d, n_rows, k, c, tn, flops, bytes_accessed):
    grid = (pl.cdiv(n_rows, tn),)              # partial last block is masked
    return pl.pallas_call(
        _linmod_kernel,
        out_shape=jax.ShapeDtypeStruct((n_rows, c), jnp.float32),
        grid=grid,
        in_specs=[
            pl.BlockSpec((tn, k), lambda i: (i, 0)),   # streamed row tiles
            pl.BlockSpec((k, c), lambda i: (0, 0)),    # weight: VMEM-resident
            pl.BlockSpec((1, c), lambda i: (0, 0)),    # bias:   VMEM-resident
        ],
        out_specs=pl.BlockSpec((tn, c), lambda i: (i, 0)),
        compiler_params=pltpu.CompilerParams(
            dimension_semantics=("parallel",),         # independent row tiles
            vmem_limit_bytes=_VMEM_LIMIT,
        ),
        cost_estimate=pl.CostEstimate(
            flops=flops, transcendentals=0, bytes_accessed=bytes_accessed
        ),
    )(x2d, w2d, b2d)


def linmod_forward(x, weight, bias, dim):
    """Pallas equivalent of linMod.forward.

    x:      any shape whose total size is divisible by `dim`
    weight: (nClasses, dim)   -- PyTorch nn.Linear convention
    bias:   (nClasses,)
    returns (out, x_flat) just like the torch module.
    """
    x_flat = x.reshape(-1, dim)                # .view(-1, dim): metadata only
    n, d = x_flat.shape
    c = weight.shape[0]
    w_t = weight.T                             # (d, c); 28x10 transpose is free
    flops = 2 * n * d * c

    if n % _PACK == 0 and n >= _PACK:
        # ---- lane-dense packed path ------------------------------------
        n_p = n // _PACK
        dp, cp = _PACK * d, _PACK * c          # 1792 = 14*128, 640 = 5*128
        x_p = x_flat.reshape(n_p, dp)          # contiguous -> zero-copy
        # Block-diagonal weight with 64 copies of W^T; built once per call
        # (cache it outside the step function in a real training loop).
        w_p = jnp.kron(jnp.eye(_PACK, dtype=w_t.dtype), w_t)   # (dp, cp)
        b_p = jnp.tile(bias, _PACK).reshape(1, cp)
        tn = _choose_tile(n_p, _MIN_TILE_PACKED, _MAX_TILE_PACKED)
        out_p = _run(
            x_p, w_p, b_p, n_p, dp, cp, tn,
            flops=flops,
            bytes_accessed=4 * (n * d + dp * cp + n * c),
        )
        out = out_p.reshape(n, c)              # contiguous -> zero-copy
    else:
        # ---- narrow fallback path (tail / small inputs) ----------------
        b2 = bias.reshape(1, c)
        tn = _choose_tile(n, _MIN_TILE_NARROW, _MAX_TILE_NARROW)
        out = _run(
            x_flat, w_t, b2, n, d, c, tn,
            flops=flops,
            bytes_accessed=4 * (n * d + d * c + n * c),
        )

    return out, x_flat


if __name__ == "__main__":
    DIM = 28          # linMod default embedding dim
    N_CLASSES = 10    # stands in for opts.nClasses
    key = jax.random.PRNGKey(0)
    kx1, kx2, kw, kb = jax.random.split(key, 4)

    # deterministic nn.Linear-style parameters
    bound = 1.0 / (DIM ** 0.5)
    weight = jax.random.uniform(kw, (N_CLASSES, DIM), jnp.float32, -bound, bound)
    bias = jax.random.uniform(kb, (N_CLASSES,), jnp.float32, -bound, bound)

    # 1) narrow fallback path: (2, 4, 28) -> N = 8 rows (not a multiple of 64)
    x_small = jax.random.normal(kx1, (2, 4, DIM), jnp.float32)
    out_s, xf_s = linmod_forward(x_small, weight, bias, DIM)

    # 2) lane-dense packed path: (8, 16, 28) -> N = 128 rows (multiple of 64)
    x_big = jax.random.normal(kx2, (8, 16, DIM), jnp.float32)
    out_b, xf_b = linmod_forward(x_big, weight, bias, DIM)

    jax.block_until_ready((out_s, xf_s, out_b, xf_b))

    for x, out, xf in ((x_small, out_s, xf_s), (x_big, out_b, xf_b)):
        ref = x.reshape(-1, DIM) @ weight.T + bias
        assert out.shape == ref.shape
        assert xf.shape == (ref.shape[0], DIM)
        assert jnp.allclose(out, ref, atol=1e-5, rtol=1e-5)
        assert jnp.allclose(xf, x.reshape(-1, DIM))

    print("KERNEL_OK")
</pallas_src>

<mosaic_0001>
module attributes {stable_mosaic.version = 11 : i64} {
  func.func @_linmod_kernel(%arg0: i32, %arg1: memref<8x28xf32, #tpu.memory_space<vmem>>, %arg2: memref<28x10xf32, #tpu.memory_space<vmem>>, %arg3: memref<1x10xf32, #tpu.memory_space<vmem>>, %arg4: memref<8x10xf32, #tpu.memory_space<vmem>>) attributes {dimension_semantics = [#tpu.dimension_semantics<parallel>], iteration_bounds = array<i64: 1>, scalar_prefetch = 0 : i64, scratch_operands = 0 : i64, tpu.core_type = #tpu.core_type<tc>, window_params = [{transform_indices = @transform_0, window_bounds = array<i64: 8, 28>}, {pipeline_mode = #tpu.pipeline_mode<synchronous>, transform_indices = @transform_1, window_bounds = array<i64: 28, 10>}, {pipeline_mode = #tpu.pipeline_mode<synchronous>, transform_indices = @transform_2, window_bounds = array<i64: 1, 10>}, {transform_indices = @transform_3, window_bounds = array<i64: 8, 10>}]} {
    %c0 = arith.constant 0 : index
    %c0_0 = arith.constant 0 : index
    %0 = vector.load %arg1[%c0, %c0_0] : memref<8x28xf32, #tpu.memory_space<vmem>>, vector<8x28xf32>
    %c0_1 = arith.constant 0 : index
    %c0_2 = arith.constant 0 : index
    %1 = vector.load %arg2[%c0_1, %c0_2] : memref<28x10xf32, #tpu.memory_space<vmem>>, vector<28x10xf32>
    %cst = arith.constant dense<0.000000e+00> : vector<8x10xf32>
    %2 = tpu.matmul %0, %1, %cst {dimension_numbers = #tpu.dot_dimension_numbers<[1], [0], [0], [1], [0, 0, 1, 1], [], []>, precision = #tpu.contract_precision<fp32>} : vector<8x28xf32>, vector<28x10xf32>, vector<8x10xf32> -> vector<8x10xf32>
    %c0_3 = arith.constant 0 : index
    %c0_4 = arith.constant 0 : index
    %3 = vector.load %arg3[%c0_3, %c0_4] : memref<1x10xf32, #tpu.memory_space<vmem>>, vector<1x10xf32>
    %4 = vector.broadcast %3 : vector<1x10xf32> to vector<8x10xf32>
    %5 = arith.addf %2, %4 : vector<8x10xf32>
    %c0_5 = arith.constant 0 : index
    %c0_6 = arith.constant 0 : index
    %6 = vector.load %arg4[%c0_5, %c0_6] : memref<8x10xf32, #tpu.memory_space<vmem>>, vector<8x10xf32>
    tpu.vector_store %arg4[%c0_5, %c0_6], %5 {strides = array<i32>} : memref<8x10xf32, #tpu.memory_space<vmem>>, vector<8x10xf32>,
    return
  }
  func.func @transform_0(%arg0: i32) -> (i32, i32) {
    %c0_i32 = arith.constant 0 : i32
    %c0_i32_0 = arith.constant 0 : i32
    return %arg0, %c0_i32 : i32, i32
  }
  func.func @transform_1(%arg0: i32) -> (i32, i32) {
    %c0_i32 = arith.constant 0 : i32
    %c0_i32_0 = arith.constant 0 : i32
    %c0_i32_1 = arith.constant 0 : i32
    return %c0_i32, %c0_i32_0 : i32, i32
  }
  func.func @transform_2(%arg0: i32) -> (i32, i32) {
    %c0_i32 = arith.constant 0 : i32
    %c0_i32_0 = arith.constant 0 : i32
    %c0_i32_1 = arith.constant 0 : i32
    return %c0_i32, %c0_i32_0 : i32, i32
  }
  func.func @transform_3(%arg0: i32) -> (i32, i32) {
    %c0_i32 = arith.constant 0 : i32
    %c0_i32_0 = arith.constant 0 : i32
    return %arg0, %c0_i32 : i32, i32
  }
}

</mosaic_0001>

<llo_original>
// kernel: tpu_custom_call.1
$region0: #{tpu_custom_call.1}
  #allocation0 [shape = 'u32[]', space=smem, size = 0x4, offset = 0x4, fixed_abs, tag = 'smem constant byte address 0x4 - core index']
  #allocation1 [shape = 'u32[144,128]{1,0:T(1,128)}', space=vmem, size = 0x12000, scoped, tag = 'internal scratch']
  %s0 = inlined_call_operand.vmem [shape: f32[8,28], index: 0, kind: input, shape index: {}]
  %s1 = inlined_call_operand.vmem [shape: f32[28,10], index: 1, kind: input, shape index: {}]
  %s2 = inlined_call_operand.vmem [shape: f32[1,10], index: 2, kind: input, shape index: {}]
  %s3 = inlined_call_operand.hbm [shape: f32[8,10], index: 3, kind: output, shape index: {}]
  %s4 = sld [smem:[#allocation0]]
  $region22: #{tpu_custom_call.1} parent=0
    _
  %s6 = ssub.s32 1, %s4
  %s7 = scalar_select 0, %s6, %s4
  $region1: #{tpu_custom_call.1} parent=0
    #allocation2 [shape = 'u8[4096]{0}', space=vmem, size = 0x1000, scoped, tag = 'output window, operand 0, single buffered']
    #allocation3 [shape = 's32[1]{0}', space=sflag, size = 0x4, scoped, tag = 'scoped memory for tpu_custom_call.1']
    %8 = vsyncpa [#allocation3], 0
    // Predicated region
    $region2: #{tpu_custom_call.1} parent=1 // pred_check
      _
    $region3: #{tpu_custom_call.1} parent=1 // pred_check_branch
      %10 = sbr.rel (0) target = $region5
    $region4: #{tpu_custom_call.1} parent=1 // pred_region
      _
    $region5: #{tpu_custom_call.1} parent=1 // pred_fallthru
      _
    // Predicated region
    $region6: #{tpu_custom_call.1} parent=1 // pred_check
      _
    $region7: #{tpu_custom_call.1} parent=1 // pred_check_branch
      %12 = sbr.rel (0) target = $region9
    $region8: #{tpu_custom_call.1} parent=1 // pred_region
      _
    $region9: #{tpu_custom_call.1} parent=1 // pred_fallthru
      _
    // Predicated region
    $region10: #{tpu_custom_call.1} parent=1 // pred_check
      _
    $region11: #{tpu_custom_call.1} parent=1 // pred_check_branch
      %14 = sbr.rel (0) target = $region13
    $region12: #{tpu_custom_call.1} parent=1 // pred_region
      _
    $region13: #{tpu_custom_call.1} parent=1 // pred_fallthru
      _
    %v15 = vld [vmem:[%s0] sm:$0xff]
    %v16 = vld [vmem:[%s1] sm:$0xff]
    %v17 = vld [vmem:[%s1 + $0x8] sm:$0xff]
    %v18 = vld [vmem:[%s1 + $0x10] sm:$0xff]
    %v19 = vld [vmem:[%s1 + $0x18] sm:$0xf]
    %v20 = vld [vmem:[%s2] sm:$0x1]
    %v22 = vlaneseq
    %v23 = vshrl.u32 %v22, 7
    %v24 = vsub.s32 0, %v23
    %v25 = vrot.slane %v20, %v24
    %vm27 = vcmask 228352
    %v29 = vsel %vm27, %v15, 0
    %vm31 = vcmask 1043456
    %v33 = vsel %vm31, %v19, 0
    %35 = vmatprep.subr.mxu0 0.0
    %v36 = vand.u32 %v16, 4294901760
    %37 = vmatpush1.msra.mxu0 %v36
    %38 = vmatprep.subr.mxu0 0.0
    %v39 = vand.u32 %v17, 4294901760
    %40 = vmatpush1.msra.mxu0 %v39
    %41 = vmatprep.subr.mxu0 0.0
    %v42 = vand.u32 %v18, 4294901760
    %43 = vmatpush1.msra.mxu0 %v42
    %44 = vmatprep.subr.mxu0 0.0
    %v45 = vand.u32 %v33, 4294901760
    %46 = vmatpush1.msra.mxu0 %v45
    %47 = vmatprep.subr.mxu0 0.0
    %48 = vmatpush1.msra.mxu0 0.0
    %49 = vmatprep.subr.mxu0 0.0
    %50 = vmatpush1.msra.mxu0 0.0
    %51 = vmatprep.subr.mxu0 0.0
    %52 = vmatpush1.msra.mxu0 0.0
    %53 = vmatprep.subr.mxu0 0.0
    %54 = vmatpush1.msra.mxu0 0.0
    %55 = vmatprep.subr.mxu0 0.0
    %56 = vmatpush1.msra.mxu0 0.0
    %57 = vmatprep.subr.mxu0 0.0
    %58 = vmatpush1.msra.mxu0 0.0
    %59 = vmatprep.subr.mxu0 0.0
    %60 = vmatpush1.msra.mxu0 0.0
    %61 = vmatprep.subr.mxu0 0.0
    %62 = vmatpush1.msra.mxu0 0.0
    %63 = vmatprep.subr.mxu0 0.0
    %64 = vmatpush1.msra.mxu0 0.0
    %65 = vmatprep.subr.mxu0 0.0
    %66 = vmatpush1.msra.mxu0 0.0
    %67 = vmatprep.subr.mxu0 0.0
    %68 = vmatpush1.msra.mxu0 0.0
    %69 = vmatprep.subr.mxu0 0.0
    %70 = vmatpush1.msra.mxu0 0.0
    %71 = vmatprep.subr.mxu0 0.0
    %72 = vmatpush1.msra.mxu0 0.0
    %73 = vmatprep.subr.mxu0 0.0
    %74 = vmatpush1.msra.mxu0 0.0
    %75 = vmatprep.subr.mxu0 0.0
    %76 = vmatpush1.msra.mxu0 0.0
    %77 = vmatprep.subr.mxu0 0.0
    %78 = vmatpush1.msra.mxu0 0.0
    %79 = vmatprep.subr.mxu0 0.0
    %80 = vmatpush1.msra.mxu0 0.0
    %81 = vmatprep.subr.mxu0 0.0
    %82 = vmatpush1.msra.mxu0 0.0
    %83 = vmatprep.subr.mxu0 0.0
    %84 = vmatpush1.msra.mxu0 0.0
    %85 = vmatprep.subr.mxu0 0.0
    %86 = vmatpush1.msra.mxu0 0.0
    %87 = vmatprep.subr.mxu0 0.0
    %88 = vmatpush1.msra.mxu0 0.0
    %89 = vmatprep.subr.mxu0 0.0
    %90 = vmatpush1.msra.mxu0 0.0
    %91 = vmatprep.subr.mxu0 0.0
    %92 = vmatpush1.msra.mxu0 0.0
    %93 = vmatprep.subr.mxu0 0.0
    %94 = vmatpush1.msra.mxu0 0.0
    %95 = vmatprep.subr.mxu0 0.0
    %96 = vmatpush1.msra.mxu0 0.0
    %97 = vmatprep.subr.mxu0 0.0
    %98 = vmatpush1.msra.mxu0 0.0
    %99 = vmatprep.subr.mxu0 0.0
    %100 = vmatpush1.msra.mxu0 0.0
    %101 = vmatprep.subr.mxu0 0.0
    %102 = vmatpush1.msra.mxu0 0.0
    %103 = vmatprep.mubr.f32.mxu0 0.0
    %v104 = vand.u32 %v29, 4294901760
    %v105 = vsub.f32 %v29, %v104
    %v106 = vand.u32 %v105, 4294901760
    %v107 = vsub.f32 %v105, %v106
    %v108 = vand.u32 %v107, 4294901760
    %109 = vmatmul.mubr.f32.gmra.mrb[0].mxu0 %v108
    %v110 = vpop.f32.mrb[0].mxu0
    %v111 = vadd.f32 %v25, %v110
    %v112 = vpop.f32.mrb[0].mxu0
    %113 = vdwg.mxu0
    %114 = vmatprep.subr.mxu0 0.0
    %v115 = vand.u32 %v16, 4294901760
    %v116 = vsub.f32 %v16, %v115
    %v117 = vand.u32 %v116, 4294901760
    %v118 = vsub.f32 %v116, %v117
    %v119 = vand.u32 %v118, 4294901760
    %120 = vmatpush1.msra.mxu0 %v119
    %121 = vmatprep.subr.mxu0 0.0
    %v122 = vand.u32 %v17, 4294901760
    %v123 = vsub.f32 %v17, %v122
    %v124 = vand.u32 %v123, 4294901760
    %v125 = vsub.f32 %v123, %v124
    %v126 = vand.u32 %v125, 4294901760
    %127 = vmatpush1.msra.mxu0 %v126
    %128 = vmatprep.subr.mxu0 0.0
    %v129 = vand.u32 %v18, 4294901760
    %v130 = vsub.f32 %v18, %v129
    %v131 = vand.u32 %v130, 4294901760
    %v132 = vsub.f32 %v130, %v131
    %v133 = vand.u32 %v132, 4294901760
    %134 = vmatpush1.msra.mxu0 %v133
    %135 = vmatprep.subr.mxu0 0.0
    %v136 = vand.u32 %v33, 4294901760
    %v137 = vsub.f32 %v33, %v136
    %v138 = vand.u32 %v137, 4294901760
    %v139 = vsub.f32 %v137, %v138
    %v140 = vand.u32 %v139, 4294901760
    %141 = vmatpush1.msra.mxu0 %v140
    %142 = vmatprep.subr.mxu0 0.0
    %143 = vmatpush1.msra.mxu0 0.0
    %144 = vmatprep.subr.mxu0 0.0
    %145 = vmatpush1.msra.mxu0 0.0
    %146 = vmatprep.subr.mxu0 0.0
    %147 = vmatpush1.msra.mxu0 0.0
    %148 = vmatprep.subr.mxu0 0.0
    %149 = vmatpush1.msra.mxu0 0.0
    %150 = vmatprep.subr.mxu0 0.0
    %151 = vmatpush1.msra.mxu0 0.0
    %152 = vmatprep.subr.mxu0 0.0
    %153 = vmatpush1.msra.mxu0 0.0
    %154 = vmatprep.subr.mxu0 0.0
    %155 = vmatpush1.msra.mxu0 0.0
    %156 = vmatprep.subr.mxu0 0.0
    %157 = vmatpush1.msra.mxu0 0.0
    %158 = vmatprep.subr.mxu0 0.0
    %159 = vmatpush1.msra.mxu0 0.0
    %160 = vmatprep.subr.mxu0 0.0
    %161 = vmatpush1.msra.mxu0 0.0
    %162 = vmatprep.subr.mxu0 0.0
    %163 = vmatpush1.msra.mxu0 0.0
    %164 = vmatprep.subr.mxu0 0.0
    %165 = vmatpush1.msra.mxu0 0.0
    %166 = vmatprep.subr.mxu0 0.0
    %167 = vmatpush1.msra.mxu0 0.0
    %168 = vmatprep.subr.mxu0 0.0
    %169 = vmatpush1.msra.mxu0 0.0
    %170 = vmatprep.subr.mxu0 0.0
    %171 = vmatpush1.msra.mxu0 0.0
    %172 = vmatprep.subr.mxu0 0.0
    %173 = vmatpush1.msra.mxu0 0.0
    %174 = vmatprep.subr.mxu0 0.0
    %175 = vmatpush1.msra.mxu0 0.0
    %176 = vmatprep.subr.mxu0 0.0
    %177 = vmatpush1.msra.mxu0 0.0
    %178 = vmatprep.subr.mxu0 0.0
    %179 = vmatpush1.msra.mxu0 0.0
    %180 = vmatprep.subr.mxu0 0.0
    %181 = vmatpush1.msra.mxu0 0.0
    %182 = vmatprep.subr.mxu0 0.0
    %183 = vmatpush1.msra.mxu0 0.0
    %184 = vmatprep.subr.mxu0 0.0
    %185 = vmatpush1.msra.mxu0 0.0
    %186 = vmatprep.subr.mxu0 0.0
    %187 = vmatpush1.msra.mxu0 0.0
    %188 = vmatprep.subr.mxu0 0.0
    %189 = vmatpush1.msra.mxu0 0.0
    %190 = vmatprep.subr.mxu0 0.0
    %191 = vmatpush1.msra.mxu0 0.0
    %192 = vmatprep.subr.mxu0 0.0
    %193 = vmatpush1.msra.mxu0 0.0
    %194 = vmatprep.subr.mxu0 0.0
    %195 = vmatpush1.msra.mxu0 0.0
    %196 = vmatprep.subr.mxu0 0.0
    %197 = vmatpush1.msra.mxu0 0.0
    %198 = vmatprep.mubr.f32.mxu0 0.0
    %v199 = vand.u32 %v29, 4294901760
    %200 = vmatmul.mubr.f32.gmra.mrb[0].mxu0 %v199
    %v201 = vpop.f32.mrb[0].mxu0
    %v202 = vadd.f32 %v111, %v201
    %v203 = vpop.f32.mrb[0].mxu0
    %204 = vdwg.mxu0
    %205 = vmatprep.subr.mxu0 0.0
    %v206 = vand.u32 %v16, 4294901760
    %v207 = vsub.f32 %v16, %v206
    %208 = vmatpush1.msra.mxu0 %v207
    %209 = vmatprep.subr.mxu0 0.0
    %v210 = vand.u32 %v17, 4294901760
    %v211 = vsub.f32 %v17, %v210
    %212 = vmatpush1.msra.mxu0 %v211
    %213 = vmatprep.subr.mxu0 0.0
    %v214 = vand.u32 %v18, 4294901760
    %v215 = vsub.f32 %v18, %v214
    %216 = vmatpush1.msra.mxu0 %v215
    %217 = vmatprep.subr.mxu0 0.0
    %v218 = vand.u32 %v33, 4294901760
    %v219 = vsub.f32 %v33, %v218
    %220 = vmatpush1.msra.mxu0 %v219
    %221 = vmatprep.subr.mxu0 0.0
    %222 = vmatpush1.msra.mxu0 0.0
    %223 = vmatprep.subr.mxu0 0.0
    %224 = vmatpush1.msra.mxu0 0.0
    %225 = vmatprep.subr.mxu0 0.0
    %226 = vmatpush1.msra.mxu0 0.0
    %227 = vmatprep.subr.mxu0 0.0
    %228 = vmatpush1.msra.mxu0 0.0
    %229 = vmatprep.subr.mxu0 0.0
    %230 = vmatpush1.msra.mxu0 0.0
    %231 = vmatprep.subr.mxu0 0.0
    %232 = vmatpush1.msra.mxu0 0.0
    %233 = vmatprep.subr.mxu0 0.0
    %234 = vmatpush1.msra.mxu0 0.0
    %235 = vmatprep.subr.mxu0 0.0
    %236 = vmatpush1.msra.mxu0 0.0
    %237 = vmatprep.subr.mxu0 0.0
    %238 = vmatpush1.msra.mxu0 0.0
    %239 = vmatprep.subr.mxu0 0.0
    %240 = vmatpush1.msra.mxu0 0.0
    %241 = vmatprep.subr.mxu0 0.0
    %242 = vmatpush1.msra.mxu0 0.0
    %243 = vmatprep.subr.mxu0 0.0
    %244 = vmatpush1.msra.mxu0 0.0
    %245 = vmatprep.subr.mxu0 0.0
    %246 = vmatpush1.msra.mxu0 0.0
    %247 = vmatprep.subr.mxu0 0.0
    %248 = vmatpush1.msra.mxu0 0.0
    %249 = vmatprep.subr.mxu0 0.0
    %250 = vmatpush1.msra.mxu0 0.0
    %251 = vmatprep.subr.mxu0 0.0
    %252 = vmatpush1.msra.mxu0 0.0
    %253 = vmatprep.subr.mxu0 0.0
    %254 = vmatpush1.msra.mxu0 0.0
    %255 = vmatprep.subr.mxu0 0.0
    %256 = vmatpush1.msra.mxu0 0.0
    %257 = vmatprep.subr.mxu0 0.0
    %258 = vmatpush1.msra.mxu0 0.0
    %259 = vmatprep.subr.mxu0 0.0
    %260 = vmatpush1.msra.mxu0 0.0
    %261 = vmatprep.subr.mxu0 0.0
    %262 = vmatpush1.msra.mxu0 0.0
    %263 = vmatprep.subr.mxu0 0.0
    %264 = vmatpush1.msra.mxu0 0.0
    %265 = vmatprep.subr.mxu0 0.0
    %266 = vmatpush1.msra.mxu0 0.0
    %267 = vmatprep.subr.mxu0 0.0
    %268 = vmatpush1.msra.mxu0 0.0
    %269 = vmatprep.subr.mxu0 0.0
    %270 = vmatpush1.msra.mxu0 0.0
    %271 = vmatprep.subr.mxu0 0.0
    %272 = vmatpush1.msra.mxu0 0.0
    %273 = vmatprep.subr.mxu0 0.0
    %274 = vmatpush1.msra.mxu0 0.0
    %275 = vmatprep.subr.mxu0 0.0
    %276 = vmatpush1.msra.mxu0 0.0
    %277 = vmatprep.mubr.f32.mxu0 0.0
    %v278 = vand.u32 %v29, 4294901760
    %v279 = vsub.f32 %v29, %v278
    %280 = vmatmul.mubr.f32.gmra.mrb[0].mxu0 %v279
    %v281 = vpop.f32.mrb[0].mxu0
    %v282 = vadd.f32 %v202, %v281
    %v283 = vpop.f32.mrb[0].mxu0
    %284 = vdwg.mxu0
    %285 = vmatprep.subr.mxu0 0.0
    %v286 = vand.u32 %v16, 4294901760
    %287 = vmatpush1.msra.mxu0 %v286
    %288 = vmatprep.subr.mxu0 0.0
    %v289 = vand.u32 %v17, 4294901760
    %290 = vmatpush1.msra.mxu0 %v289
    %291 = vmatprep.subr.mxu0 0.0
    %v292 = vand.u32 %v18, 4294901760
    %293 = vmatpush1.msra.mxu0 %v292
    %294 = vmatprep.subr.mxu0 0.0
    %v295 = vand.u32 %v33, 4294901760
    %296 = vmatpush1.msra.mxu0 %v295
    %297 = vmatprep.subr.mxu0 0.0
    %298 = vmatpush1.msra.mxu0 0.0
    %299 = vmatprep.subr.mxu0 0.0
    %300 = vmatpush1.msra.mxu0 0.0
    %301 = vmatprep.subr.mxu0 0.0
    %302 = vmatpush1.msra.mxu0 0.0
    %303 = vmatprep.subr.mxu0 0.0
    %304 = vmatpush1.msra.mxu0 0.0
    %305 = vmatprep.subr.mxu0 0.0
    %306 = vmatpush1.msra.mxu0 0.0
    %307 = vmatprep.subr.mxu0 0.0
    %308 = vmatpush1.msra.mxu0 0.0
    %309 = vmatprep.subr.mxu0 0.0
    %310 = vmatpush1.msra.mxu0 0.0
    %311 = vmatprep.subr.mxu0 0.0
    %312 = vmatpush1.msra.mxu0 0.0
    %313 = vmatprep.subr.mxu0 0.0
    %314 = vmatpush1.msra.mxu0 0.0
    %315 = vmatprep.subr.mxu0 0.0
    %316 = vmatpush1.msra.mxu0 0.0
    %317 = vmatprep.subr.mxu0 0.0
    %318 = vmatpush1.msra.mxu0 0.0
    %319 = vmatprep.subr.mxu0 0.0
    %320 = vmatpush1.msra.mxu0 0.0
    %321 = vmatprep.subr.mxu0 0.0
    %322 = vmatpush1.msra.mxu0 0.0
    %323 = vmatprep.subr.mxu0 0.0
    %324 = vmatpush1.msra.mxu0 0.0
    %325 = vmatprep.subr.mxu0 0.0
    %326 = vmatpush1.msra.mxu0 0.0
    %327 = vmatprep.subr.mxu0 0.0
    %328 = vmatpush1.msra.mxu0 0.0
    %329 = vmatprep.subr.mxu0 0.0
    %330 = vmatpush1.msra.mxu0 0.0
    %331 = vmatprep.subr.mxu0 0.0
    %332 = vmatpush1.msra.mxu0 0.0
    %333 = vmatprep.subr.mxu0 0.0
    %334 = vmatpush1.msra.mxu0 0.0
    %335 = vmatprep.subr.mxu0 0.0
    %336 = vmatpush1.msra.mxu0 0.0
    %337 = vmatprep.subr.mxu0 0.0
    %338 = vmatpush1.msra.mxu0 0.0
    %339 = vmatprep.subr.mxu0 0.0
    %340 = vmatpush1.msra.mxu0 0.0
    %341 = vmatprep.subr.mxu0 0.0
    %342 = vmatpush1.msra.mxu0 0.0
    %343 = vmatprep.subr.mxu0 0.0
    %344 = vmatpush1.msra.mxu0 0.0
    %345 = vmatprep.subr.mxu0 0.0
    %346 = vmatpush1.msra.mxu0 0.0
    %347 = vmatprep.subr.mxu0 0.0
    %348 = vmatpush1.msra.mxu0 0.0
    %349 = vmatprep.subr.mxu0 0.0
    %350 = vmatpush1.msra.mxu0 0.0
    %351 = vmatprep.subr.mxu0 0.0
    %352 = vmatpush1.msra.mxu0 0.0
    %353 = vmatprep.mubr.f32.mxu0 0.0
    %v354 = vand.u32 %v29, 4294901760
    %v355 = vsub.f32 %v29, %v354
    %v356 = vand.u32 %v355, 4294901760
    %357 = vmatmul.mubr.f32.gmra.mrb[0].mxu0 %v356
    %v358 = vpop.f32.mrb[0].mxu0
    %v359 = vadd.f32 %v282, %v358
    %v360 = vpop.f32.mrb[0].mxu0
    %361 = vdwg.mxu0
    %362 = vmatprep.subr.mxu0 0.0
    %v363 = vand.u32 %v16, 4294901760
    %v364 = vsub.f32 %v16, %v363
    %v365 = vand.u32 %v364, 4294901760
    %366 = vmatpush1.msra.mxu0 %v365
    %367 = vmatprep.subr.mxu0 0.0
    %v368 = vand.u32 %v17, 4294901760
    %v369 = vsub.f32 %v17, %v368
    %v370 = vand.u32 %v369, 4294901760
    %371 = vmatpush1.msra.mxu0 %v370
    %372 = vmatprep.subr.mxu0 0.0
    %v373 = vand.u32 %v18, 4294901760
    %v374 = vsub.f32 %v18, %v373
    %v375 = vand.u32 %v374, 4294901760
    %376 = vmatpush1.msra.mxu0 %v375
    %377 = vmatprep.subr.mxu0 0.0
    %v378 = vand.u32 %v33, 4294901760
    %v379 = vsub.f32 %v33, %v378
    %v380 = vand.u32 %v379, 4294901760
    %381 = vmatpush1.msra.mxu0 %v380
    %382 = vmatprep.subr.mxu0 0.0
    %383 = vmatpush1.msra.mxu0 0.0
    %384 = vmatprep.subr.mxu0 0.0
    %385 = vmatpush1.msra.mxu0 0.0
    %386 = vmatprep.subr.mxu0 0.0
    %387 = vmatpush1.msra.mxu0 0.0
    %388 = vmatprep.subr.mxu0 0.0
    %389 = vmatpush1.msra.mxu0 0.0
    %390 = vmatprep.subr.mxu0 0.0
    %391 = vmatpush1.msra.mxu0 0.0
    %392 = vmatprep.subr.mxu0 0.0
    %393 = vmatpush1.msra.mxu0 0.0
    %394 = vmatprep.subr.mxu0 0.0
    %395 = vmatpush1.msra.mxu0 0.0
    %396 = vmatprep.subr.mxu0 0.0
    %397 = vmatpush1.msra.mxu0 0.0
    %398 = vmatprep.subr.mxu0 0.0
    %399 = vmatpush1.msra.mxu0 0.0
    %400 = vmatprep.subr.mxu0 0.0
    %401 = vmatpush1.msra.mxu0 0.0
    %402 = vmatprep.subr.mxu0 0.0
    %403 = vmatpush1.msra.mxu0 0.0
    %404 = vmatprep.subr.mxu0 0.0
    %405 = vmatpush1.msra.mxu0 0.0
    %406 = vmatprep.subr.mxu0 0.0
    %407 = vmatpush1.msra.mxu0 0.0
    %408 = vmatprep.subr.mxu0 0.0
    %409 = vmatpush1.msra.mxu0 0.0
    %410 = vmatprep.subr.mxu0 0.0
    %411 = vmatpush1.msra.mxu0 0.0
    %412 = vmatprep.subr.mxu0 0.0
    %413 = vmatpush1.msra.mxu0 0.0
    %414 = vmatprep.subr.mxu0 0.0
    %415 = vmatpush1.msra.mxu0 0.0
    %416 = vmatprep.subr.mxu0 0.0
    %417 = vmatpush1.msra.mxu0 0.0
    %418 = vmatprep.subr.mxu0 0.0
    %419 = vmatpush1.msra.mxu0 0.0
    %420 = vmatprep.subr.mxu0 0.0
    %421 = vmatpush1.msra.mxu0 0.0
    %422 = vmatprep.subr.mxu0 0.0
    %423 = vmatpush1.msra.mxu0 0.0
    %424 = vmatprep.subr.mxu0 0.0
    %425 = vmatpush1.msra.mxu0 0.0
    %426 = vmatprep.subr.mxu0 0.0
    %427 = vmatpush1.msra.mxu0 0.0
    %428 = vmatprep.subr.mxu0 0.0
    %429 = vmatpush1.msra.mxu0 0.0
    %430 = vmatprep.subr.mxu0 0.0
    %431 = vmatpush1.msra.mxu0 0.0
    %432 = vmatprep.subr.mxu0 0.0
    %433 = vmatpush1.msra.mxu0 0.0
    %434 = vmatprep.subr.mxu0 0.0
    %435 = vmatpush1.msra.mxu0 0.0
    %436 = vmatprep.subr.mxu0 0.0
    %437 = vmatpush1.msra.mxu0 0.0
    %438 = vmatprep.mubr.f32.mxu0 0.0
    %v439 = vand.u32 %v29, 4294901760
    %440 = vmatmul.mubr.f32.gmra.mrb[0].mxu0 %v439
    %v441 = vpop.f32.mrb[0].mxu0
    %v442 = vadd.f32 %v359, %v441
    %v443 = vpop.f32.mrb[0].mxu0
    %444 = vdwg.mxu0
    %445 = vmatprep.subr.mxu0 0.0
    %v446 = vand.u32 %v16, 4294901760
    %447 = vmatpush1.msra.mxu0 %v446
    %448 = vmatprep.subr.mxu0 0.0
    %v449 = vand.u32 %v17, 4294901760
    %450 = vmatpush1.msra.mxu0 %v449
    %451 = vmatprep.subr.mxu0 0.0
    %v452 = vand.u32 %v18, 4294901760
    %453 = vmatpush1.msra.mxu0 %v452
    %454 = vmatprep.subr.mxu0 0.0
    %v455 = vand.u32 %v33, 4294901760
    %456 = vmatpush1.msra.mxu0 %v455
    %457 = vmatprep.subr.mxu0 0.0
    %458 = vmatpush1.msra.mxu0 0.0
    %459 = vmatprep.subr.mxu0 0.0
    %460 = vmatpush1.msra.mxu0 0.0
    %461 = vmatprep.subr.mxu0 0.0
    %462 = vmatpush1.msra.mxu0 0.0
    %463 = vmatprep.subr.mxu0 0.0
    %464 = vmatpush1.msra.mxu0 0.0
    %465 = vmatprep.subr.mxu0 0.0
    %466 = vmatpush1.msra.mxu0 0.0
    %467 = vmatprep.subr.mxu0 0.0
    %468 = vmatpush1.msra.mxu0 0.0
    %469 = vmatprep.subr.mxu0 0.0
    %470 = vmatpush1.msra.mxu0 0.0
    %471 = vmatprep.subr.mxu0 0.0
    %472 = vmatpush1.msra.mxu0 0.0
    %473 = vmatprep.subr.mxu0 0.0
    %474 = vmatpush1.msra.mxu0 0.0
    %475 = vmatprep.subr.mxu0 0.0
    %476 = vmatpush1.msra.mxu0 0.0
    %477 = vmatprep.subr.mxu0 0.0
    %478 = vmatpush1.msra.mxu0 0.0
    %479 = vmatprep.subr.mxu0 0.0
    %480 = vmatpush1.msra.mxu0 0.0
    %481 = vmatprep.subr.mxu0 0.0
    %482 = vmatpush1.msra.mxu0 0.0
    %483 = vmatprep.subr.mxu0 0.0
    %484 = vmatpush1.msra.mxu0 0.0
    %485 = vmatprep.subr.mxu0 0.0
    %486 = vmatpush1.msra.mxu0 0.0
    %487 = vmatprep.subr.mxu0 0.0
    %488 = vmatpush1.msra.mxu0 0.0
    %489 = vmatprep.subr.mxu0 0.0
    %490 = vmatpush1.msra.mxu0 0.0
    %491 = vmatprep.subr.mxu0 0.0
    %492 = vmatpush1.msra.mxu0 0.0
    %493 = vmatprep.subr.mxu0 0.0
    %494 = vmatpush1.msra.mxu0 0.0
    %495 = vmatprep.subr.mxu0 0.0
    %496 = vmatpush1.msra.mxu0 0.0
    %497 = vmatprep.subr.mxu0 0.0
    %498 = vmatpush1.msra.mxu0 0.0
    %499 = vmatprep.subr.mxu0 0.0
    %500 = vmatpush1.msra.mxu0 0.0
    %501 = vmatprep.subr.mxu0 0.0
    %502 = vmatpush1.msra.mxu0 0.0
    %503 = vmatprep.subr.mxu0 0.0
    %504 = vmatpush1.msra.mxu0 0.0
    %505 = vmatprep.subr.mxu0 0.0
    %506 = vmatpush1.msra.mxu0 0.0
    %507 = vmatprep.subr.mxu0 0.0
    %508 = vmatpush1.msra.mxu0 0.0
    %509 = vmatprep.subr.mxu0 0.0
    %510 = vmatpush1.msra.mxu0 0.0
    %511 = vmatprep.subr.mxu0 0.0
    %512 = vmatpush1.msra.mxu0 0.0
    %513 = vmatprep.mubr.f32.mxu0 0.0
    %v514 = vand.u32 %v29, 4294901760
    %515 = vmatmul.mubr.f32.gmra.mrb[0].mxu0 %v514
    %v516 = vpop.f32.mrb[0].mxu0
    %v517 = vadd.f32 %v442, %v516
    %v518 = vpop.f32.mrb[0].mxu0
    %519 = vdwg.mxu0
    %vm520 = vcmask 80896
    %521 = vst.msk [vmem:[#allocation2] sm:$0xff] %vm520, %v517
    // Predicated region
    $region14: #{tpu_custom_call.1} parent=1 // pred_check
      _
    $region15: #{tpu_custom_call.1} parent=1 // pred_check_branch
      %523 = sbr.rel (0) target = $region17
    $region16: #{tpu_custom_call.1} parent=1 // pred_region
      %s525 = ssub.s32 128, 128
      %526 = vsyncadd [#allocation3], %s525
      %s528 = sshll.u32 [#allocation2], 4
      %s529 = int_to_ptr.vmem [resolvable:$true] %s528
      %531 = dma.vmem_to_hbm [thread:$0]  %s529, 128, %s3, [#allocation3]
    $region17: #{tpu_custom_call.1} parent=1 // pred_fallthru
      _
    // Predicated region
    $region18: #{tpu_custom_call.1} parent=1 // pred_check
      _
    $region19: #{tpu_custom_call.1} parent=1 // pred_check_branch
      %533 = sbr.rel (0) target = $region21
    $region20: #{tpu_custom_call.1} parent=1 // pred_region
      %534 = dma.done [#allocation3], 128
    $region21: #{tpu_custom_call.1} parent=1 // pred_fallthru
      _
    %535 = vsyncpa [#allocation3], 1

</llo_original>
